<compile_context>
chip_gen: v6e
topology: v6e:2x2x1
jax: 0.10.0
libtpu: 0.0.40
codegen_flags: <defaults>
</compile_context>

<pallas_src>
import jax
import jax.numpy as jnp
from jax.experimental import pallas as pl
from jax.experimental.pallas import tpu as pltpu

BN_EPS = 1e-5

_MAX_S_TILE = 65536                      # lanes per spatial tile (upper cap)
_TILE_VMEM_BUDGET = 12 * 1024 * 1024     # double-buffered in+out blocks (fits v5e 16 MiB scoped)
_FUSED_VMEM_BUDGET = 8 * 1024 * 1024     # whole-tensor single-call threshold
_VMEM_LIMIT = 32 * 1024 * 1024           # safe on v5e/v6e/v7x (<= physical everywhere)


def _pick_s_tile(S, cin2, cout2):
    """Largest 128-multiple lane tile whose double-buffered blocks fit the budget."""
    per_lane_bytes = 4 * 2 * (cin2 + cout2)          # f32, 2x-buffered input + output blocks
    s_tile = _TILE_VMEM_BUDGET // per_lane_bytes
    s_tile = min(int(s_tile), _MAX_S_TILE)
    s_tile = max(128, (s_tile // 128) * 128)
    if S <= s_tile:
        return S                                      # single full-width block
    return s_tile


# ----------------------------------------------------------------------------
# Fused single-call path: conv1x1 + BatchNorm (batch stats) + ReLU, all in VMEM
# ----------------------------------------------------------------------------
def _fu_fused_kernel(x_ref, w_ref, gamma_ref, beta_ref, o_ref, y_scratch):
    """x_ref: (B, Cin2, S); w_ref: (Cout2, Cin2); gamma/beta: (Cout2, 1);
    o_ref: (B, Cout2, S); y_scratch: (B, Cout2, S) f32."""
    B, _, S = x_ref.shape
    cout2 = w_ref.shape[0]

    for b in range(B):                                # B is small and static
        y_scratch[b] = jnp.dot(w_ref[...], x_ref[b],
                               preferred_element_type=jnp.float32)

    count = jnp.float32(B * S)
    sum_c = jnp.zeros((cout2, 1), jnp.float32)
    for b in range(B):
        sum_c = sum_c + jnp.sum(y_scratch[b], axis=1, keepdims=True)
    mean = sum_c / count

    var_c = jnp.zeros((cout2, 1), jnp.float32)        # centered (two-pass) variance
    for b in range(B):
        d = y_scratch[b] - mean
        var_c = var_c + jnp.sum(d * d, axis=1, keepdims=True)
    var = var_c / count

    scale = gamma_ref[...] * jax.lax.rsqrt(var + BN_EPS)
    shift = beta_ref[...] - mean * scale
    for b in range(B):
        o_ref[b] = jnp.maximum(y_scratch[b] * scale + shift, 0.0).astype(o_ref.dtype)


# ----------------------------------------------------------------------------
# Tiled two-pass path
# ----------------------------------------------------------------------------
def _make_stats_kernel(rem):
    """Pass 1: per-(batch, out-channel) sum / sum-of-squares of conv1x1 output.

    `rem` is the (static) number of valid lanes in the last spatial tile
    (0 means every tile is full).  Invalid lanes are masked in-kernel instead
    of padding ff in HBM.
    """
    def kernel(x_ref, w_ref, sum_ref, sq_ref, sum_acc, sq_acc):
        s = pl.program_id(1)

        @pl.when(s == 0)
        def _init():
            sum_acc[...] = jnp.zeros_like(sum_acc)
            sq_acc[...] = jnp.zeros_like(sq_acc)

        x = x_ref[0]                                   # (Cin2, S_TILE)
        if rem:
            lane = jax.lax.broadcasted_iota(jnp.int32, x.shape, dimension=1)
            is_last = s == pl.num_programs(1) - 1
            keep = jnp.logical_or(jnp.logical_not(is_last), lane < rem)
            x = jnp.where(keep, x, 0.0)                # zero lanes contribute nothing

        y = jnp.dot(w_ref[...], x, preferred_element_type=jnp.float32)  # (Cout2, S_TILE)
        sum_acc[...] += jnp.sum(y, axis=1, keepdims=True)
        sq_acc[...] += jnp.sum(y * y, axis=1, keepdims=True)

        @pl.when(s == pl.num_programs(1) - 1)
        def _finalize():
            sum_ref[0] = sum_acc[...]
            sq_ref[0] = sq_acc[...]

    return kernel


def _fu_apply_kernel(x_ref, w_ref, scale_ref, shift_ref, o_ref):
    """Pass 2: recompute conv1x1 tile, apply fused BN scale/shift + ReLU.
    Out-of-bounds output lanes of a ragged last tile are discarded by Pallas,
    so garbage input lanes are harmless here (column-wise independence)."""
    y = jnp.dot(w_ref[...], x_ref[0], preferred_element_type=jnp.float32)  # (Cout2, S_TILE)
    y = y * scale_ref[...] + shift_ref[...]
    o_ref[0] = jnp.maximum(y, 0.0).astype(o_ref.dtype)


def _conv_bn_relu_pallas(ff, w, gamma, beta, *, s_tile=None, allow_fused=True):
    """ReLU(BatchNorm(conv1x1(ff))) with training-mode batch statistics.

    ff    : (B, Cin2, S) f32 — spectral tensor, channels-first, spatial flattened.
    w     : (Cout2, Cin2) f32 ; gamma, beta : (Cout2,) f32
    returns (B, Cout2, S) f32
    """
    B, cin2, S = ff.shape
    cout2 = w.shape[0]
    gamma2 = gamma.reshape(cout2, 1)
    beta2 = beta.reshape(cout2, 1)

    matmul_flops = 2 * B * cout2 * cin2 * S

    # ---- fused whole-tensor path --------------------------------------------
    fused_bytes = 4 * B * S * (2 * cin2 + 3 * cout2)   # 2x in bufs + scratch + 2x out bufs
    if allow_fused and s_tile is None and fused_bytes <= _FUSED_VMEM_BUDGET:
        return pl.pallas_call(
            _fu_fused_kernel,
            out_shape=jax.ShapeDtypeStruct((B, cout2, S), jnp.float32),
            scratch_shapes=[pltpu.VMEM((B, cout2, S), jnp.float32)],
            cost_estimate=pl.CostEstimate(
                flops=matmul_flops + 6 * B * cout2 * S,
                transcendentals=cout2,
                bytes_accessed=4 * B * S * (cin2 + cout2)),
        )(ff, w, gamma2, beta2)

    # ---- tiled two-pass path -------------------------------------------------
    if s_tile is None:
        s_tile = _pick_s_tile(S, cin2, cout2)
    s_tile = min(s_tile, S)
    num_s = pl.cdiv(S, s_tile)
    rem = S % s_tile

    # pass 1: per-batch channel sums / sums of squares
    sums, sqs = pl.pallas_call(
        _make_stats_kernel(rem),
        out_shape=(
            jax.ShapeDtypeStruct((B, cout2, 1), jnp.float32),
            jax.ShapeDtypeStruct((B, cout2, 1), jnp.float32),
        ),
        grid=(B, num_s),
        in_specs=[
            pl.BlockSpec((1, cin2, s_tile), lambda b, s: (b, 0, s)),
            pl.BlockSpec((cout2, cin2), lambda b, s: (0, 0)),
        ],
        out_specs=(
            pl.BlockSpec((1, cout2, 1), lambda b, s: (b, 0, 0)),
            pl.BlockSpec((1, cout2, 1), lambda b, s: (b, 0, 0)),
        ),
        scratch_shapes=[
            pltpu.VMEM((cout2, 1), jnp.float32),
            pltpu.VMEM((cout2, 1), jnp.float32),
        ],
        compiler_params=pltpu.CompilerParams(
            dimension_semantics=("parallel", "arbitrary"),
            vmem_limit_bytes=_VMEM_LIMIT),
        cost_estimate=pl.CostEstimate(
            flops=matmul_flops + 3 * B * cout2 * S,
            transcendentals=0,
            bytes_accessed=4 * B * cin2 * S),
    )(ff, w)

    # tiny BN algebra in XLA (once, outside the pipelined loops)
    count = jnp.float32(B * S)
    mean = jnp.sum(sums[:, :, 0], axis=0) / count                       # (Cout2,)
    var = jnp.maximum(jnp.sum(sqs[:, :, 0], axis=0) / count - mean * mean, 0.0)
    scale = gamma * jax.lax.rsqrt(var + BN_EPS)
    shift = beta - mean * scale

    # pass 2: conv1x1 + fused scale/shift + ReLU, lane-dense stores
    out = pl.pallas_call(
        _fu_apply_kernel,
        out_shape=jax.ShapeDtypeStruct((B, cout2, S), jnp.float32),
        grid=(B, num_s),
        in_specs=[
            pl.BlockSpec((1, cin2, s_tile), lambda b, s: (b, 0, s)),
            pl.BlockSpec((cout2, cin2), lambda b, s: (0, 0)),
            pl.BlockSpec((cout2, 1), lambda b, s: (0, 0)),
            pl.BlockSpec((cout2, 1), lambda b, s: (0, 0)),
        ],
        out_specs=pl.BlockSpec((1, cout2, s_tile), lambda b, s: (b, 0, s)),
        compiler_params=pltpu.CompilerParams(
            dimension_semantics=("parallel", "parallel"),
            vmem_limit_bytes=_VMEM_LIMIT),
        cost_estimate=pl.CostEstimate(
            flops=matmul_flops + 3 * B * cout2 * S,
            transcendentals=0,
            bytes_accessed=4 * B * (cin2 + cout2) * S),
    )(ff, w, scale.reshape(cout2, 1), shift.reshape(cout2, 1))
    return out


def fourier_unit_forward(x, w_conv, gamma, beta, *, s_tile=None, allow_fused=True):
    """FourierUnit.forward (default config).

    x      : (B, C_in, H, W) float32, NCHW
    w_conv : (2*C_out, 2*C_in) float32   (PyTorch Conv2d 1x1 weight, squeezed)
    gamma  : (2*C_out,) float32          (BN weight)
    beta   : (2*C_out,) float32          (BN bias)
    returns: (B, C_out, H, W) float32
    """
    B, C, H, W = x.shape
    cout2 = w_conv.shape[0]
    C_out = cout2 // 2

    # TODO(synk): rfft2/irfft2 have no Pallas primitive; they stay in XLA.
    ffted = jnp.fft.rfft2(x, norm="ortho")                     # (B, C, H, Wf) complex64
    Wf = ffted.shape[-1]

    # stack(real, imag, dim=-1).permute(0,1,4,2,3).view(B, 2C, H, Wf), kept in
    # the natural channels-first layout (no extra HBM round-trip transposes,
    # no padding — the ragged last tile is masked inside the stats kernel).
    ff = jnp.stack((ffted.real, ffted.imag), axis=2)           # (B, C, 2, H, Wf)
    S = H * Wf
    ff = ff.reshape(B, 2 * C, S).astype(jnp.float32)           # (B, 2C, H*Wf)

    out = _conv_bn_relu_pallas(
        ff,
        w_conv.astype(jnp.float32),
        gamma.astype(jnp.float32),
        beta.astype(jnp.float32),
        s_tile=s_tile,
        allow_fused=allow_fused,
    )                                                          # (B, 2*C_out, S)

    out = out.reshape(B, C_out, 2, H, Wf)
    out_c = jax.lax.complex(out[:, :, 0], out[:, :, 1])        # (B, C_out, H, Wf)
    output = jnp.fft.irfft2(out_c, s=(H, W), norm="ortho")     # (B, C_out, H, W)
    return output.astype(x.dtype)


def _reference_forward(x, w_conv, gamma, beta):
    """Pure-JAX reference mirroring the PyTorch module (training-mode BN)."""
    B, C, H, W = x.shape
    cout2 = w_conv.shape[0]
    C_out = cout2 // 2
    ffted = jnp.fft.rfft2(x, norm="ortho")
    Wf = ffted.shape[-1]
    ff = jnp.stack((ffted.real, ffted.imag), axis=2).reshape(B, 2 * C, H, Wf)
    y = jnp.einsum("oi,bihw->bohw", w_conv, ff)                          # 1x1 conv, bias=False
    mean = jnp.mean(y, axis=(0, 2, 3), keepdims=True)
    var = jnp.mean((y - mean) ** 2, axis=(0, 2, 3), keepdims=True)       # biased (training mode)
    y = (y - mean) * jax.lax.rsqrt(var + BN_EPS)
    y = y * gamma[None, :, None, None] + beta[None, :, None, None]
    y = jnp.maximum(y, 0.0)
    y = y.reshape(B, C_out, 2, H, Wf)
    out_c = jax.lax.complex(y[:, :, 0], y[:, :, 1])
    return jnp.fft.irfft2(out_c, s=(H, W), norm="ortho")


if __name__ == "__main__":
    # Small shapes consistent with the module: in_channels=4, out_channels=4.
    B, C_in, C_out, H, W = 2, 4, 4, 16, 16

    key = jax.random.PRNGKey(0)
    kx, kw, kg, kb = jax.random.split(key, 4)

    x = jax.random.normal(kx, (B, C_in, H, W), dtype=jnp.float32)

    # Conv2d(2*C_in -> 2*C_out, kernel=1, bias=False): weight (2*C_out, 2*C_in).
    w_conv = 0.1 * jax.random.normal(kw, (2 * C_out, 2 * C_in), dtype=jnp.float32)
    # BatchNorm2d(2*C_out) affine params.
    gamma = 1.0 + 0.1 * jax.random.normal(kg, (2 * C_out,), dtype=jnp.float32)
    beta = 0.1 * jax.random.normal(kb, (2 * C_out,), dtype=jnp.float32)

    ref = jax.block_until_ready(_reference_forward(x, w_conv, gamma, beta))

    # Fused single-call path (default for small spectral tensors).
    out_fused = jax.block_until_ready(fourier_unit_forward(x, w_conv, gamma, beta))
    assert out_fused.shape == (B, C_out, H, W)
    assert bool(jnp.all(jnp.isfinite(out_fused)))
    assert bool(jnp.allclose(out_fused, ref, rtol=1e-4, atol=1e-4))

    # Tiled two-pass path with a ragged last tile (S = 16*9 = 144, s_tile = 128,
    # rem = 16) — exercises the in-kernel tail masking that replaced jnp.pad.
    out_tiled = jax.block_until_ready(
        fourier_unit_forward(x, w_conv, gamma, beta, s_tile=128, allow_fused=False))
    assert out_tiled.shape == (B, C_out, H, W)
    assert bool(jnp.all(jnp.isfinite(out_tiled)))
    assert bool(jnp.allclose(out_tiled, ref, rtol=1e-4, atol=1e-4))

    print("KERNEL_OK")
</pallas_src>

<mosaic_0001>
module attributes {stable_mosaic.version = 11 : i64} {
  func.func @_fu_fused_kernel(%arg0: memref<2x8x144xf32, #tpu.memory_space<vmem>>, %arg1: memref<8x8xf32, #tpu.memory_space<vmem>>, %arg2: memref<8x1xf32, #tpu.memory_space<vmem>>, %arg3: memref<8x1xf32, #tpu.memory_space<vmem>>, %arg4: memref<2x8x144xf32, #tpu.memory_space<vmem>>, %arg5: memref<2x8x144xf32, #tpu.memory_space<vmem>>) attributes {dimension_semantics = [], scalar_prefetch = 0 : i64, scratch_operands = 1 : i64, tpu.core_type = #tpu.core_type<tc>} {
    %c0 = arith.constant 0 : index
    %c0_0 = arith.constant 0 : index
    %0 = vector.load %arg1[%c0, %c0_0] : memref<8x8xf32, #tpu.memory_space<vmem>>, vector<8x8xf32>
    %c0_1 = arith.constant 0 : index
    %c0_2 = arith.constant 0 : index
    %c0_3 = arith.constant 0 : index
    %1 = vector.load %arg0[%c0_1, %c0_2, %c0_3] : memref<2x8x144xf32, #tpu.memory_space<vmem>>, vector<1x8x144xf32>
    %2 = vector.shape_cast %1 : vector<1x8x144xf32> to vector<8x144xf32>
    %cst = arith.constant dense<0.000000e+00> : vector<8x144xf32>
    %3 = tpu.matmul %0, %2, %cst {dimension_numbers = #tpu.dot_dimension_numbers<[1], [0], [0], [1], [0, 0, 1, 1], [], []>} : vector<8x8xf32>, vector<8x144xf32>, vector<8x144xf32> -> vector<8x144xf32>
    %c0_4 = arith.constant 0 : index
    %c0_5 = arith.constant 0 : index
    %c0_6 = arith.constant 0 : index
    %4 = vector.load %arg5[%c0_4, %c0_5, %c0_6] : memref<2x8x144xf32, #tpu.memory_space<vmem>>, vector<1x8x144xf32>
    %5 = vector.shape_cast %4 : vector<1x8x144xf32> to vector<8x144xf32>
    %6 = vector.shape_cast %3 : vector<8x144xf32> to vector<1x8x144xf32>
    tpu.vector_store %arg5[%c0_4, %c0_5, %c0_6], %6 {strides = array<i32>} : memref<2x8x144xf32, #tpu.memory_space<vmem>>, vector<1x8x144xf32>,
    %c0_7 = arith.constant 0 : index
    %c0_8 = arith.constant 0 : index
    %7 = vector.load %arg1[%c0_7, %c0_8] : memref<8x8xf32, #tpu.memory_space<vmem>>, vector<8x8xf32>
    %c1 = arith.constant 1 : index
    %c0_9 = arith.constant 0 : index
    %c0_10 = arith.constant 0 : index
    %8 = vector.load %arg0[%c1, %c0_9, %c0_10] : memref<2x8x144xf32, #tpu.memory_space<vmem>>, vector<1x8x144xf32>
    %9 = vector.shape_cast %8 : vector<1x8x144xf32> to vector<8x144xf32>
    %cst_11 = arith.constant dense<0.000000e+00> : vector<8x144xf32>
    %10 = tpu.matmul %7, %9, %cst_11 {dimension_numbers = #tpu.dot_dimension_numbers<[1], [0], [0], [1], [0, 0, 1, 1], [], []>} : vector<8x8xf32>, vector<8x144xf32>, vector<8x144xf32> -> vector<8x144xf32>
    %c1_12 = arith.constant 1 : index
    %c0_13 = arith.constant 0 : index
    %c0_14 = arith.constant 0 : index
    %11 = vector.load %arg5[%c1_12, %c0_13, %c0_14] : memref<2x8x144xf32, #tpu.memory_space<vmem>>, vector<1x8x144xf32>
    %12 = vector.shape_cast %11 : vector<1x8x144xf32> to vector<8x144xf32>
    %13 = vector.shape_cast %10 : vector<8x144xf32> to vector<1x8x144xf32>
    tpu.vector_store %arg5[%c1_12, %c0_13, %c0_14], %13 {strides = array<i32>} : memref<2x8x144xf32, #tpu.memory_space<vmem>>, vector<1x8x144xf32>,
    %cst_15 = arith.constant 0.000000e+00 : f32
    %14 = vector.broadcast %cst_15 : f32 to vector<8x1xf32>
    %c0_16 = arith.constant 0 : index
    %c0_17 = arith.constant 0 : index
    %c0_18 = arith.constant 0 : index
    %15 = vector.load %arg5[%c0_16, %c0_17, %c0_18] : memref<2x8x144xf32, #tpu.memory_space<vmem>>, vector<1x8x144xf32>
    %16 = vector.shape_cast %15 : vector<1x8x144xf32> to vector<8x144xf32>
    %cst_19 = arith.constant dense<0.000000e+00> : vector<8xf32>
    %17 = vector.multi_reduction <add>, %16, %cst_19 [1] : vector<8x144xf32> to vector<8xf32>
    %18 = vector.shape_cast %17 : vector<8xf32> to vector<8x1xf32>
    %19 = arith.addf %14, %18 : vector<8x1xf32>
    %c1_20 = arith.constant 1 : index
    %c0_21 = arith.constant 0 : index
    %c0_22 = arith.constant 0 : index
    %20 = vector.load %arg5[%c1_20, %c0_21, %c0_22] : memref<2x8x144xf32, #tpu.memory_space<vmem>>, vector<1x8x144xf32>
    %21 = vector.shape_cast %20 : vector<1x8x144xf32> to vector<8x144xf32>
    %cst_23 = arith.constant dense<0.000000e+00> : vector<8xf32>
    %22 = vector.multi_reduction <add>, %21, %cst_23 [1] : vector<8x144xf32> to vector<8xf32>
    %23 = vector.shape_cast %22 : vector<8xf32> to vector<8x1xf32>
    %24 = arith.addf %19, %23 : vector<8x1xf32>
    %cst_24 = arith.constant 2.880000e+02 : f32
    %25 = vector.broadcast %cst_24 : f32 to vector<8x1xf32>
    %26 = arith.divf %24, %25 : vector<8x1xf32>
    %cst_25 = arith.constant 0.000000e+00 : f32
    %27 = vector.broadcast %cst_25 : f32 to vector<8x1xf32>
    %c0_26 = arith.constant 0 : index
    %c0_27 = arith.constant 0 : index
    %c0_28 = arith.constant 0 : index
    %28 = vector.load %arg5[%c0_26, %c0_27, %c0_28] : memref<2x8x144xf32, #tpu.memory_space<vmem>>, vector<1x8x144xf32>
    %29 = vector.shape_cast %28 : vector<1x8x144xf32> to vector<8x144xf32>
    %30 = vector.broadcast %26 : vector<8x1xf32> to vector<8x144xf32>
    %31 = arith.subf %29, %30 : vector<8x144xf32>
    %32 = arith.mulf %31, %31 : vector<8x144xf32>
    %cst_29 = arith.constant dense<0.000000e+00> : vector<8xf32>
    %33 = vector.multi_reduction <add>, %32, %cst_29 [1] : vector<8x144xf32> to vector<8xf32>
    %34 = vector.shape_cast %33 : vector<8xf32> to vector<8x1xf32>
    %35 = arith.addf %27, %34 : vector<8x1xf32>
    %c1_30 = arith.constant 1 : index
    %c0_31 = arith.constant 0 : index
    %c0_32 = arith.constant 0 : index
    %36 = vector.load %arg5[%c1_30, %c0_31, %c0_32] : memref<2x8x144xf32, #tpu.memory_space<vmem>>, vector<1x8x144xf32>
    %37 = vector.shape_cast %36 : vector<1x8x144xf32> to vector<8x144xf32>
    %38 = vector.broadcast %26 : vector<8x1xf32> to vector<8x144xf32>
    %39 = arith.subf %37, %38 : vector<8x144xf32>
    %40 = arith.mulf %39, %39 : vector<8x144xf32>
    %cst_33 = arith.constant dense<0.000000e+00> : vector<8xf32>
    %41 = vector.multi_reduction <add>, %40, %cst_33 [1] : vector<8x144xf32> to vector<8xf32>
    %42 = vector.shape_cast %41 : vector<8xf32> to vector<8x1xf32>
    %43 = arith.addf %35, %42 : vector<8x1xf32>
    %cst_34 = arith.constant 2.880000e+02 : f32
    %44 = vector.broadcast %cst_34 : f32 to vector<8x1xf32>
    %45 = arith.divf %43, %44 : vector<8x1xf32>
    %c0_35 = arith.constant 0 : index
    %c0_36 = arith.constant 0 : index
    %46 = vector.load %arg2[%c0_35, %c0_36] : memref<8x1xf32, #tpu.memory_space<vmem>>, vector<8x1xf32>
    %cst_37 = arith.constant 9.99999974E-6 : f32
    %47 = vector.broadcast %cst_37 : f32 to vector<8x1xf32>
    %48 = arith.addf %45, %47 : vector<8x1xf32>
    %49 = math.rsqrt %48 : vector<8x1xf32>
    %50 = arith.mulf %46, %49 : vector<8x1xf32>
    %c0_38 = arith.constant 0 : index
    %c0_39 = arith.constant 0 : index
    %51 = vector.load %arg3[%c0_38, %c0_39] : memref<8x1xf32, #tpu.memory_space<vmem>>, vector<8x1xf32>
    %52 = arith.mulf %26, %50 : vector<8x1xf32>
    %53 = arith.subf %51, %52 : vector<8x1xf32>
    %c0_40 = arith.constant 0 : index
    %c0_41 = arith.constant 0 : index
    %c0_42 = arith.constant 0 : index
    %54 = vector.load %arg5[%c0_40, %c0_41, %c0_42] : memref<2x8x144xf32, #tpu.memory_space<vmem>>, vector<1x8x144xf32>
    %55 = vector.shape_cast %54 : vector<1x8x144xf32> to vector<8x144xf32>
    %56 = vector.broadcast %50 : vector<8x1xf32> to vector<8x144xf32>
    %57 = arith.mulf %55, %56 : vector<8x144xf32>
    %58 = vector.broadcast %53 : vector<8x1xf32> to vector<8x144xf32>
    %59 = arith.addf %57, %58 : vector<8x144xf32>
    %cst_43 = arith.constant 0.000000e+00 : f32
    %60 = vector.broadcast %cst_43 : f32 to vector<8x144xf32>
    %61 = arith.maximumf %59, %60 : vector<8x144xf32>
    %c0_44 = arith.constant 0 : index
    %c0_45 = arith.constant 0 : index
    %c0_46 = arith.constant 0 : index
    %62 = vector.load %arg4[%c0_44, %c0_45, %c0_46] : memref<2x8x144xf32, #tpu.memory_space<vmem>>, vector<1x8x144xf32>
    %63 = vector.shape_cast %62 : vector<1x8x144xf32> to vector<8x144xf32>
    %64 = vector.shape_cast %61 : vector<8x144xf32> to vector<1x8x144xf32>
    tpu.vector_store %arg4[%c0_44, %c0_45, %c0_46], %64 {strides = array<i32>} : memref<2x8x144xf32, #tpu.memory_space<vmem>>, vector<1x8x144xf32>,
    %c1_47 = arith.constant 1 : index
    %c0_48 = arith.constant 0 : index
    %c0_49 = arith.constant 0 : index
    %65 = vector.load %arg5[%c1_47, %c0_48, %c0_49] : memref<2x8x144xf32, #tpu.memory_space<vmem>>, vector<1x8x144xf32>
    %66 = vector.shape_cast %65 : vector<1x8x144xf32> to vector<8x144xf32>
    %67 = vector.broadcast %50 : vector<8x1xf32> to vector<8x144xf32>
    %68 = arith.mulf %66, %67 : vector<8x144xf32>
    %69 = vector.broadcast %53 : vector<8x1xf32> to vector<8x144xf32>
    %70 = arith.addf %68, %69 : vector<8x144xf32>
    %cst_50 = arith.constant 0.000000e+00 : f32
    %71 = vector.broadcast %cst_50 : f32 to vector<8x144xf32>
    %72 = arith.maximumf %70, %71 : vector<8x144xf32>
    %c1_51 = arith.constant 1 : index
    %c0_52 = arith.constant 0 : index
    %c0_53 = arith.constant 0 : index
    %73 = vector.load %arg4[%c1_51, %c0_52, %c0_53] : memref<2x8x144xf32, #tpu.memory_space<vmem>>, vector<1x8x144xf32>
    %74 = vector.shape_cast %73 : vector<1x8x144xf32> to vector<8x144xf32>
    %75 = vector.shape_cast %72 : vector<8x144xf32> to vector<1x8x144xf32>
    tpu.vector_store %arg4[%c1_51, %c0_52, %c0_53], %75 {strides = array<i32>} : memref<2x8x144xf32, #tpu.memory_space<vmem>>, vector<1x8x144xf32>,
    return
  }
}

</mosaic_0001>

<llo_original>
// kernel: tpu_custom_call.1
$region0: #{tpu_custom_call.1}
  #allocation0 [shape = 'u32[]', space=smem, size = 0x4, offset = 0x4, fixed_abs, tag = 'smem constant byte address 0x4 - core index']
  #allocation1 [shape = 'u32[144,128]{1,0:T(1,128)}', space=vmem, size = 0x12000, scoped, tag = 'internal scratch']
  #allocation2 [shape = 'f32[2,8,144]{2,1,0:T(8,128)}', space=vmem, size = 0x4000, scoped, tag = 'scratch operand']
  %s0 = inlined_call_operand.hbm [shape: f32[2,8,144], index: 0, kind: input, shape index: {}]
  %s1 = inlined_call_operand.vmem [shape: f32[8,8], index: 1, kind: input, shape index: {}]
  %s2 = inlined_call_operand.vmem [shape: f32[8,1], index: 2, kind: input, shape index: {}]
  %s3 = inlined_call_operand.vmem [shape: f32[8,1], index: 3, kind: input, shape index: {}]
  %s4 = inlined_call_operand.hbm [shape: f32[2,8,144], index: 4, kind: output, shape index: {}]
  %s5 = sld [smem:[#allocation0]]
  $region30: #{tpu_custom_call.1} parent=0
    _
  %s7 = ssub.s32 1, %s5
  %s8 = scalar_select 0, %s7, %s5
  $region1: #{tpu_custom_call.1} parent=0
    #allocation3 [shape = 'u8[16384]{0}', space=vmem, size = 0x4000, scoped, tag = 'input window, operand 0, single buffered']
    #allocation4 [shape = 's32[1]{0}', space=sflag, size = 0x4, scoped, tag = 'scoped memory for tpu_custom_call.1']
    #allocation5 [shape = 's32[1]{0}', space=sflag, size = 0x4, scoped, tag = 'scoped memory for tpu_custom_call.1']
    #allocation6 [shape = 'u8[16384]{0}', space=vmem, size = 0x4000, scoped, tag = 'output window, operand 0, single buffered']
    %9 = vsyncpa [#allocation4], 0
    %10 = vsyncpa [#allocation5], 0
    // Predicated region
    $region2: #{tpu_custom_call.1} parent=1 // pred_check
      _
    $region3: #{tpu_custom_call.1} parent=1 // pred_check_branch
      %12 = sbr.rel (0) target = $region5
    $region4: #{tpu_custom_call.1} parent=1 // pred_region
      %s14 = ssub.s32 512, 512
      %15 = vsyncadd [#allocation4], %s14
      %s16 = sshll.u32 [#allocation3], 4
      %s17 = int_to_ptr.vmem [resolvable:$true] %s16
      %22 = dma.hbm_to_vmem [thread:$0]  %s0, 512, %s17, [#allocation4], 256, 256, 16
    $region5: #{tpu_custom_call.1} parent=1 // pred_fallthru
      _
    // Predicated region
    $region6: #{tpu_custom_call.1} parent=1 // pred_check
      _
    $region7: #{tpu_custom_call.1} parent=1 // pred_check_branch
      %24 = sbr.rel (0) target = $region9
    $region8: #{tpu_custom_call.1} parent=1 // pred_region
      _
    $region9: #{tpu_custom_call.1} parent=1 // pred_fallthru
      _
    // Predicated region
    $region10: #{tpu_custom_call.1} parent=1 // pred_check
      _
    $region11: #{tpu_custom_call.1} parent=1 // pred_check_branch
      %26 = sbr.rel (0) target = $region13
    $region12: #{tpu_custom_call.1} parent=1 // pred_region
      _
    $region13: #{tpu_custom_call.1} parent=1 // pred_fallthru
      _
    // Predicated region
    $region14: #{tpu_custom_call.1} parent=1 // pred_check
      _
    $region15: #{tpu_custom_call.1} parent=1 // pred_check_branch
      %28 = sbr.rel (0) target = $region17
    $region16: #{tpu_custom_call.1} parent=1 // pred_region
      _
    $region17: #{tpu_custom_call.1} parent=1 // pred_fallthru
      _
    // Predicated region
    $region18: #{tpu_custom_call.1} parent=1 // pred_check
      _
    $region19: #{tpu_custom_call.1} parent=1 // pred_check_branch
      %30 = sbr.rel (0) target = $region21
    $region20: #{tpu_custom_call.1} parent=1 // pred_region
      %31 = dma.done [#allocation4], 512
    $region21: #{tpu_custom_call.1} parent=1 // pred_fallthru
      _
    %v32 = vld [vmem:[%s1] sm:$0xff]
    %v33 = vld [vmem:[#allocation3] sm:$0xff]
    %v34 = vld [vmem:[#allocation3 + $0x8] sm:$0xff]
    %vm35 = vcmask 64512
    %v37 = vsel %vm35, %v32, 0
    %39 = vmatprep.subr.mxu0 0.0
    %40 = vmatpush1.msra.mxu0 0.0
    %41 = vmatprep.subr.mxu0 0.0
    %42 = vmatpush1.msra.mxu0 0.0
    %43 = vmatprep.subr.mxu0 0.0
    %44 = vmatpush1.msra.mxu0 0.0
    %45 = vmatprep.subr.mxu0 0.0
    %46 = vmatpush1.msra.mxu0 0.0
    %47 = vmatprep.subr.mxu0 0.0
    %48 = vmatpush1.msra.mxu0 0.0
    %49 = vmatprep.subr.mxu0 0.0
    %50 = vmatpush1.msra.mxu0 0.0
    %51 = vmatprep.subr.mxu0 0.0
    %52 = vmatpush1.msra.mxu0 0.0
    %53 = vmatprep.subr.mxu0 0.0
    %54 = vmatpush1.msra.mxu0 0.0
    %55 = vmatprep.subr.mxu0 0.0
    %56 = vmatpush1.msra.mxu0 0.0
    %57 = vmatprep.subr.mxu0 0.0
    %58 = vmatpush1.msra.mxu0 0.0
    %59 = vmatprep.subr.mxu0 0.0
    %60 = vmatpush1.msra.mxu0 0.0
    %61 = vmatprep.subr.mxu0 0.0
    %62 = vmatpush1.msra.mxu0 0.0
    %63 = vmatprep.subr.mxu0 0.0
    %64 = vmatpush1.msra.mxu0 0.0
    %65 = vmatprep.subr.mxu0 0.0
    %66 = vmatpush1.msra.mxu0 0.0
    %67 = vmatprep.subr.mxu0 0.0
    %68 = vmatpush1.msra.mxu0 0.0
    %69 = vmatprep.subr.mxu0 %v34
    %70 = vmatpush1.msra.mxu0 %v33
    %71 = vmatprep.subr.mxu0 0.0
    %72 = vmatpush2.msra.mxu0 0.0
    %73 = vmatprep.subr.mxu0 0.0
    %74 = vmatpush2.msra.mxu0 0.0
    %75 = vmatprep.subr.mxu0 0.0
    %76 = vmatpush2.msra.mxu0 0.0
    %77 = vmatprep.subr.mxu0 0.0
    %78 = vmatpush2.msra.mxu0 0.0
    %79 = vmatprep.subr.mxu0 0.0
    %80 = vmatpush2.msra.mxu0 0.0
    %81 = vmatprep.subr.mxu0 0.0
    %82 = vmatpush2.msra.mxu0 0.0
    %83 = vmatprep.subr.mxu0 0.0
    %84 = vmatpush2.msra.mxu0 0.0
    %85 = vmatprep.subr.mxu0 0.0
    %86 = vmatpush2.msra.mxu0 0.0
    %87 = vmatprep.subr.mxu0 0.0
    %88 = vmatpush2.msra.mxu0 0.0
    %89 = vmatprep.subr.mxu0 0.0
    %90 = vmatpush2.msra.mxu0 0.0
    %91 = vmatprep.subr.mxu0 0.0
    %92 = vmatpush2.msra.mxu0 0.0
    %93 = vmatprep.subr.mxu0 0.0
    %94 = vmatpush2.msra.mxu0 0.0
    %95 = vmatprep.subr.mxu0 0.0
    %96 = vmatpush2.msra.mxu0 0.0
    %97 = vmatprep.subr.mxu0 0.0
    %98 = vmatpush2.msra.mxu0 0.0
    %99 = vmatprep.subr.mxu0 0.0
    %100 = vmatpush2.msra.mxu0 0.0
    %101 = vmatprep.subr.mxu0 0.0
    %102 = vmatpush2.msra.mxu0 0.0
    %103 = vmatprep.mubr.f32.mxu0 0.0
    %104 = vmatmul.mubr.f32.gmra.mxu0 %v37
    %v105 = vpop.f32.mrf.mxu0
    %v106 = vadd.f32 0.0, %v105
    %v107 = vpop.f32.mrf.mxu0
    %v108 = vadd.f32 0.0, %v107
    %109 = vdwg.mxu0
    %110 = vst [vmem:[#allocation2] sm:$0xff] %v106
    %vm111 = vcmask 130048
    %112 = vst.msk [vmem:[#allocation2 + $0x8] sm:$0xff] %vm111, %v108
    %v113 = vld [vmem:[%s1] sm:$0xff]
    %s114 = scalar_lea.vmem [#allocation3], 16
    %v115 = vld [vmem:[%s114] sm:$0xff]
    %v116 = vld [vmem:[%s114 + $0x8] sm:$0xff]
    %v118 = vsel %vm35, %v113, 0
    %120 = vmatprep.subr.mxu0 0.0
    %121 = vmatpush1.msra.mxu0 0.0
    %122 = vmatprep.subr.mxu0 0.0
    %123 = vmatpush1.msra.mxu0 0.0
    %124 = vmatprep.subr.mxu0 0.0
    %125 = vmatpush1.msra.mxu0 0.0
    %126 = vmatprep.subr.mxu0 0.0
    %127 = vmatpush1.msra.mxu0 0.0
    %128 = vmatprep.subr.mxu0 0.0
    %129 = vmatpush1.msra.mxu0 0.0
    %130 = vmatprep.subr.mxu0 0.0
    %131 = vmatpush1.msra.mxu0 0.0
    %132 = vmatprep.subr.mxu0 0.0
    %133 = vmatpush1.msra.mxu0 0.0
    %134 = vmatprep.subr.mxu0 0.0
    %135 = vmatpush1.msra.mxu0 0.0
    %136 = vmatprep.subr.mxu0 0.0
    %137 = vmatpush1.msra.mxu0 0.0
    %138 = vmatprep.subr.mxu0 0.0
    %139 = vmatpush1.msra.mxu0 0.0
    %140 = vmatprep.subr.mxu0 0.0
    %141 = vmatpush1.msra.mxu0 0.0
    %142 = vmatprep.subr.mxu0 0.0
    %143 = vmatpush1.msra.mxu0 0.0
    %144 = vmatprep.subr.mxu0 0.0
    %145 = vmatpush1.msra.mxu0 0.0
    %146 = vmatprep.subr.mxu0 0.0
    %147 = vmatpush1.msra.mxu0 0.0
    %148 = vmatprep.subr.mxu0 0.0
    %149 = vmatpush1.msra.mxu0 0.0
    %150 = vmatprep.subr.mxu0 %v116
    %151 = vmatpush1.msra.mxu0 %v115
    %152 = vmatprep.subr.mxu0 0.0
    %153 = vmatpush2.msra.mxu0 0.0
    %154 = vmatprep.subr.mxu0 0.0
    %155 = vmatpush2.msra.mxu0 0.0
    %156 = vmatprep.subr.mxu0 0.0
    %157 = vmatpush2.msra.mxu0 0.0
    %158 = vmatprep.subr.mxu0 0.0
    %159 = vmatpush2.msra.mxu0 0.0
    %160 = vmatprep.subr.mxu0 0.0
    %161 = vmatpush2.msra.mxu0 0.0
    %162 = vmatprep.subr.mxu0 0.0
    %163 = vmatpush2.msra.mxu0 0.0
    %164 = vmatprep.subr.mxu0 0.0
    %165 = vmatpush2.msra.mxu0 0.0
    %166 = vmatprep.subr.mxu0 0.0
    %167 = vmatpush2.msra.mxu0 0.0
    %168 = vmatprep.subr.mxu0 0.0
    %169 = vmatpush2.msra.mxu0 0.0
    %170 = vmatprep.subr.mxu0 0.0
    %171 = vmatpush2.msra.mxu0 0.0
    %172 = vmatprep.subr.mxu0 0.0
    %173 = vmatpush2.msra.mxu0 0.0
    %174 = vmatprep.subr.mxu0 0.0
    %175 = vmatpush2.msra.mxu0 0.0
    %176 = vmatprep.subr.mxu0 0.0
    %177 = vmatpush2.msra.mxu0 0.0
    %178 = vmatprep.subr.mxu0 0.0
    %179 = vmatpush2.msra.mxu0 0.0
    %180 = vmatprep.subr.mxu0 0.0
    %181 = vmatpush2.msra.mxu0 0.0
    %182 = vmatprep.subr.mxu0 0.0
    %183 = vmatpush2.msra.mxu0 0.0
    %184 = vmatprep.mubr.f32.mxu0 0.0
    %185 = vmatmul.mubr.f32.gmra.mxu0 %v118
    %v186 = vpop.f32.mrf.mxu0
    %v187 = vadd.f32 0.0, %v186
    %v188 = vpop.f32.mrf.mxu0
    %v189 = vadd.f32 0.0, %v188
    %190 = vdwg.mxu0
    %s191 = scalar_lea.vmem [#allocation2], 16
    %192 = vst [vmem:[%s191] sm:$0xff] %v187
    %193 = vst.msk [vmem:[%s191 + $0x8] sm:$0xff] %vm111, %v189
    %v194 = vld [vmem:[#allocation2] sm:$0xff]
    %v195 = vld [vmem:[#allocation2 + $0x8] sm:$0xff]
    %v196 = vsel %vm111, %v195, 0.0
    %v197 = vadd.f32 %v194, %v196
    %198 = vadd.xlane.f32.xlu0 %v197
    %v199 = vpop.xlane.xlu0 %198
    %v200 = vadd.f32 %v199, 0.0
    %v201 = vld [vmem:[%s191] sm:$0xff]
    %v202 = vld [vmem:[%s191 + $0x8] sm:$0xff]
    %v203 = vsel %vm111, %v202, 0.0
    %v204 = vadd.f32 %v201, %v203
    %205 = vadd.xlane.f32.xlu0 %v204
    %v206 = vpop.xlane.xlu0 %205
    %v207 = vadd.f32 %v200, %v206
    %v208 = vrcp.pop 288.0
    %v209 = vmul.f32 %v207, %v208
    %v210 = vsub.f32 %v194, %v209
    %v211 = vsub.f32 %v195, %v209
    %v212 = vmul.f32 %v210, %v210
    %v213 = vmul.f32 %v211, %v211
    %v214 = vsel %vm111, %v213, 0.0
    %v215 = vadd.f32 %v212, %v214
    %216 = vadd.xlane.f32.xlu0 %v215
    %v217 = vpop.xlane.xlu0 %216
    %v218 = vadd.f32 %v217, 0.0
    %v219 = vsub.f32 %v201, %v209
    %v220 = vsub.f32 %v202, %v209
    %v221 = vmul.f32 %v219, %v219
    %v222 = vmul.f32 %v220, %v220
    %v223 = vsel %vm111, %v222, 0.0
    %v224 = vadd.f32 %v221, %v223
    %225 = vadd.xlane.f32.xlu0 %v224
    %v226 = vpop.xlane.xlu0 %225
    %v227 = vadd.f32 %v218, %v226
    %v228 = vmul.f32 %v227, %v208
    %v229 = vld [vmem:[%s2] sm:$0xff]
    %v230 = vadd.f32 %v228, 1e-05
    %v231 = vrsqrt.pop %v230
    %v232 = vmul.f32 %v229, %v231
    %v233 = vld [vmem:[%s3] sm:$0xff]
    %v234 = vmul.f32 %v209, %v232
    %v235 = vsub.f32 %v233, %v234
    %237 = vset.pattern.permute.xlu0 0
    %238 = vperm.xlu0 %237, %v232
    %v239 = vpop.permute.xlu0 %238
    %v241 = vmul.f32 %v194, %v239
    %v242 = vmul.f32 %v195, %v239
    %244 = vset.pattern.permute.xlu0 0
    %245 = vperm.xlu0 %244, %v235
    %v246 = vpop.permute.xlu0 %245
    %v248 = vadd.f32 %v241, %v246
    %v249 = vadd.f32 %v242, %v246
    %v250 = vmax.f32 %v248, 0.0
    %v251 = vmax.f32 %v249, 0.0
    %252 = vst [vmem:[#allocation6] sm:$0xff] %v250
    %253 = vst.msk [vmem:[#allocation6 + $0x8] sm:$0xff] %vm111, %v251
    %v254 = vld [vmem:[%s191] sm:$0xff]
    %v255 = vld [vmem:[%s191 + $0x8] sm:$0xff]
    %v256 = vmul.f32 %v254, %v239
    %v257 = vmul.f32 %v255, %v239
    %v258 = vadd.f32 %v256, %v246
    %v259 = vadd.f32 %v257, %v246
    %v260 = vmax.f32 %v258, 0.0
    %v261 = vmax.f32 %v259, 0.0
    %s262 = scalar_lea.vmem [#allocation6], 16
    %263 = vst [vmem:[%s262] sm:$0xff] %v260
    %264 = vst.msk [vmem:[%s262 + $0x8] sm:$0xff] %vm111, %v261
    // Predicated region
    $region22: #{tpu_custom_call.1} parent=1 // pred_check
      _
    $region23: #{tpu_custom_call.1} parent=1 // pred_check_branch
      %266 = sbr.rel (0) target = $region25
    $region24: #{tpu_custom_call.1} parent=1 // pred_region
      %s268 = ssub.s32 512, 512
      %269 = vsyncadd [#allocation5], %s268
      %s270 = sshll.u32 [#allocation6], 4
      %s271 = int_to_ptr.vmem [resolvable:$true] %s270
      %276 = dma.vmem_to_hbm [thread:$0]  %s271, 512, %s4, [#allocation5], 256, 256, 16
    $region25: #{tpu_custom_call.1} parent=1 // pred_fallthru
      _
    // Predicated region
    $region26: #{tpu_custom_call.1} parent=1 // pred_check
      _
    $region27: #{tpu_custom_call.1} parent=1 // pred_check_branch
      %278 = sbr.rel (0) target = $region29
    $region28: #{tpu_custom_call.1} parent=1 // pred_region
      %279 = dma.done [#allocation5], 512
    $region29: #{tpu_custom_call.1} parent=1 // pred_fallthru
      _
    %280 = vsyncpa [#allocation4], 1
    %281 = vsyncpa [#allocation5], 1

</llo_original>
